<compile_context>
chip_gen: v7x
topology: tpu7x:2x2x1
jax: 0.10.0
libtpu: 0.0.40
codegen_flags: <defaults>
</compile_context>

<pallas_src>
import functools

import jax
import jax.numpy as jnp
import numpy as np
from jax import lax
from jax.experimental import pallas as pl
from jax.experimental.pallas import tpu as pltpu


def _round_up(x, m):
    return ((x + m - 1) // m) * m


def _drb_kernel(xpad_ref, w1_ref, w2_ref, out_ref, *,
                dilation, ksize, tile_l, cres_pad, matmul_dtype):
    """Grid = (batch, L_tile).

    xpad_ref : (1, L_r + 2*d, Cp)    zero-padded input (channels-last, f32),
                                     resident across the L-tile axis.
    w1_ref   : (K, Cp, 2*Cp)         fused conv1 weights (tanh half | sigmoid half)
    w2_ref   : (Cp, Cp + Csp)        fused conv2 weights (res half | skip half)
    out_ref  : (1, tile_l, Cp + Csp) concatenated (res | skip) output tile
    """
    d = dilation
    halo = (ksize - 1) * d
    l = pl.program_id(1)
    base = pl.multiple_of(l * tile_l, 8)          # tile_l is a multiple of 8

    # One dynamic (sublane-aligned) load of the tile window + halo; the K taps
    # and the residual slice are cheap static slices of this value.
    window = xpad_ref[0, pl.ds(base, tile_l + halo), :]        # (tile_l+halo, Cp) f32

    # Dilated conv as K shifted (tile_l, Cp) @ (Cp, 2*Cp) matmuls on the MXU.
    h = None
    for k in range(ksize):
        xs = lax.slice_in_dim(window, k * d, k * d + tile_l, axis=0)
        contrib = jnp.dot(xs.astype(matmul_dtype), w1_ref[k],
                          preferred_element_type=jnp.float32)
        h = contrib if h is None else h + contrib              # (tile_l, 2*Cp) f32

    # Gated activation unit (kept in f32 on the VPU/EUP).
    gate = jnp.tanh(h[:, :cres_pad]) * jax.nn.sigmoid(h[:, cres_pad:])  # (tile_l, Cp)

    # Fused 1x1 conv: single MXU call producing (res | skip) columns.
    z = jnp.dot(gate.astype(matmul_dtype), w2_ref[...],
                preferred_element_type=jnp.float32)            # (tile_l, Cp+Csp)

    # Residual add: original x rows are the centre window of the padded buffer.
    xres = lax.slice_in_dim(window, d, d + tile_l, axis=0)     # (tile_l, Cp) f32

    # Lane-aligned stores (Cp is a multiple of 128).
    out_ref[0, :, :cres_pad] = (z[:, :cres_pad] + xres).astype(out_ref.dtype)
    out_ref[0, :, cres_pad:] = z[:, cres_pad:].astype(out_ref.dtype)


def dilated_residual_block(x_ncl, conv1_w, conv2_w, dilation, *,
                           tile_l=512, matmul_dtype=jnp.bfloat16):
    """x_ncl: (B, Cres, L) f32; conv1_w: (2*Cres, Cres, K); conv2_w: (Cres+Cskip, Cres, 1)."""
    B, Cres, L = x_ncl.shape
    two_cres, cin, K = conv1_w.shape
    assert two_cres == 2 * Cres and cin == Cres
    Cskip = conv2_w.shape[0] - Cres
    d = int(dilation)
    # conv1 output length equals L only for the dwnet config (kernel length 3, pad=dilation)
    assert 2 * d == d * (K - 1), "padding=dilation only preserves length for kernel size 3"
    halo = (K - 1) * d

    LANE = 128
    Cp = _round_up(Cres, LANE)          # padded residual-channel width
    Csp = _round_up(Cskip, LANE)        # padded skip-channel width

    # L tiling (multiple of 8, divides the rounded-up length).
    tile_l = _round_up(max(8, min(int(tile_l), _round_up(L, 8))), 8)
    L_r = _round_up(L, tile_l)
    n_l = L_r // tile_l
    Lp = L_r + 2 * d

    # channels-last view, zero-padded in L (conv halo + round-up) and channels.
    x_blc = jnp.transpose(x_ncl, (0, 2, 1))                                  # (B, L, Cres)
    x_pad = jnp.pad(x_blc, ((0, 0), (d, L_r - L + d), (0, Cp - Cres)))       # (B, Lp, Cp)

    # Fused conv1 weight: per-tap (Cp, 2*Cp) with [tanh half | sigmoid half].
    w1 = jnp.transpose(conv1_w, (2, 1, 0))                                   # (K, Cres, 2*Cres)
    w1_f = jnp.zeros((K, Cp, 2 * Cp), conv1_w.dtype)
    w1_f = w1_f.at[:, :Cres, :Cres].set(w1[:, :, :Cres])
    w1_f = w1_f.at[:, :Cres, Cp:Cp + Cres].set(w1[:, :, Cres:])
    w1_f = w1_f.astype(matmul_dtype)

    # Fused conv2 weight: (Cp, Cp + Csp) with [res half | skip half].
    w2 = jnp.transpose(conv2_w[:, :, 0], (1, 0))                             # (Cres, Cres+Cskip)
    w2_f = jnp.zeros((Cp, Cp + Csp), conv2_w.dtype)
    w2_f = w2_f.at[:Cres, :Cres].set(w2[:, :Cres])
    w2_f = w2_f.at[:Cres, Cp:Cp + Cskip].set(w2[:, Cres:])
    w2_f = w2_f.astype(matmul_dtype)

    kernel = functools.partial(_drb_kernel, dilation=d, ksize=K, tile_l=tile_l,
                               cres_pad=Cp, matmul_dtype=matmul_dtype)

    out = pl.pallas_call(
        kernel,
        out_shape=jax.ShapeDtypeStruct((B, L_r, Cp + Csp), x_ncl.dtype),
        grid_spec=pltpu.PrefetchScalarGridSpec(
            num_scalar_prefetch=0,
            grid=(B, n_l),
            in_specs=[
                # padded input: resident across the L-tile axis (index map ignores l)
                pl.BlockSpec((1, Lp, Cp), lambda b, l: (b, 0, 0)),
                pl.BlockSpec((K, Cp, 2 * Cp), lambda b, l: (0, 0, 0)),
                pl.BlockSpec((Cp, Cp + Csp), lambda b, l: (0, 0)),
            ],
            out_specs=pl.BlockSpec((1, tile_l, Cp + Csp), lambda b, l: (b, l, 0)),
        ),
        compiler_params=pltpu.CompilerParams(
            dimension_semantics=("parallel", "parallel"),   # megacore-friendly (v7x)
            vmem_limit_bytes=64 * 1024 * 1024,              # explicit budget (v5e/v7x defaults are small)
        ),
    )(x_pad, w1_f, w2_f)

    # slice away channel/length padding, back to NCL
    res = jnp.transpose(out[:, :L, :Cres], (0, 2, 1))
    skip = jnp.transpose(out[:, :L, Cp:Cp + Cskip], (0, 2, 1))
    return res, skip


def _reference(x_ncl, conv1_w, conv2_w, dilation):
    """Pure-JAX reference mirroring the PyTorch forward."""
    Cres = x_ncl.shape[1]
    dn = ("NCH", "OIH", "NCH")
    h = lax.conv_general_dilated(x_ncl, conv1_w, window_strides=(1,),
                                 padding=[(dilation, dilation)],
                                 rhs_dilation=(dilation,),
                                 dimension_numbers=dn)
    gate = jnp.tanh(h[:, :Cres]) * jax.nn.sigmoid(h[:, Cres:2 * Cres])
    z = lax.conv_general_dilated(gate, conv2_w, window_strides=(1,),
                                 padding=[(0, 0)], dimension_numbers=dn)
    res = z[:, :Cres] + x_ncl
    skip = z[:, Cres:]
    return res, skip


if __name__ == "__main__":
    # Small config consistent with the module: res depth, skip depth, kernel length 3.
    B, Cres, Cskip, L, K, DIL = 2, 8, 8, 64, 3, 2

    key = jax.random.PRNGKey(0)
    k_x, k_w1, k_w2 = jax.random.split(key, 3)

    x = jax.random.normal(k_x, (B, Cres, L), dtype=jnp.float32)
    conv1_w = jax.random.normal(k_w1, (2 * Cres, Cres, K), dtype=jnp.float32) / np.sqrt(Cres * K)
    conv2_w = jax.random.normal(k_w2, (Cres + Cskip, Cres, 1), dtype=jnp.float32) / np.sqrt(Cres)

    res_ref, skip_ref = _reference(x, conv1_w, conv2_w, DIL)

    # Exact f32-matmul path (matches the PyTorch/f32 reference tightly).
    # tile_l=16 exercises the (B, L_tiles) grid with 4 L tiles.
    res32, skip32 = dilated_residual_block(x, conv1_w, conv2_w, DIL,
                                           tile_l=16, matmul_dtype=jnp.float32)
    jax.block_until_ready((res32, skip32))
    np.testing.assert_allclose(np.asarray(res32), np.asarray(res_ref), rtol=1e-5, atol=1e-5)
    np.testing.assert_allclose(np.asarray(skip32), np.asarray(skip_ref), rtol=1e-5, atol=1e-5)

    # Default bf16-matmul fast path (v6e/v7x MXU), f32 accumulation + f32 elementwise.
    res_bf, skip_bf = dilated_residual_block(x, conv1_w, conv2_w, DIL, tile_l=16)
    jax.block_until_ready((res_bf, skip_bf))
    np.testing.assert_allclose(np.asarray(res_bf), np.asarray(res_ref), rtol=3e-2, atol=3e-2)
    np.testing.assert_allclose(np.asarray(skip_bf), np.asarray(skip_ref), rtol=3e-2, atol=3e-2)

    print("KERNEL_OK")
</pallas_src>

<mosaic_0001>
module attributes {stable_mosaic.version = 11 : i64} {
  func.func @_drb_kernel(%arg0: i32, %arg1: i32, %arg2: memref<1x68x128xf32, #tpu.memory_space<vmem>>, %arg3: memref<3x128x256xf32, #tpu.memory_space<vmem>>, %arg4: memref<128x256xf32, #tpu.memory_space<vmem>>, %arg5: memref<1x16x256xf32, #tpu.memory_space<vmem>>) attributes {dimension_semantics = [#tpu.dimension_semantics<parallel>, #tpu.dimension_semantics<parallel>], iteration_bounds = array<i64: 2, 4>, scalar_prefetch = 0 : i64, scratch_operands = 0 : i64, tpu.core_type = #tpu.core_type<tc>, window_params = [{transform_indices = @transform_0, window_bounds = array<i64: 1, 68, 128>}, {pipeline_mode = #tpu.pipeline_mode<synchronous>, transform_indices = @transform_1, window_bounds = array<i64: 3, 128, 256>}, {pipeline_mode = #tpu.pipeline_mode<synchronous>, transform_indices = @transform_2, window_bounds = array<i64: 128, 256>}, {transform_indices = @transform_3, window_bounds = array<i64: 1, 16, 256>}]} {
    %c16_i32 = arith.constant 16 : i32
    %0 = arith.muli %arg1, %c16_i32 : i32
    %1 = tpu.assume_multiple %0, 8 : i32
    %c0 = arith.constant 0 : index
    %2 = arith.index_cast %1 : i32 to index
    %c0_0 = arith.constant 0 : index
    %3 = vector.load %arg2[%c0, %2, %c0_0] : memref<1x68x128xf32, #tpu.memory_space<vmem>>, vector<1x20x128xf32>
    %4 = vector.shape_cast %3 : vector<1x20x128xf32> to vector<20x128xf32>
    %5 = vector.extract_strided_slice %4 {offsets = [0, 0], sizes = [16, 128], strides = [1, 1]} : vector<20x128xf32> to vector<16x128xf32>
    %c0_1 = arith.constant 0 : index
    %c0_2 = arith.constant 0 : index
    %c0_3 = arith.constant 0 : index
    %6 = vector.load %arg3[%c0_1, %c0_2, %c0_3] : memref<3x128x256xf32, #tpu.memory_space<vmem>>, vector<1x128x256xf32>
    %7 = vector.shape_cast %6 : vector<1x128x256xf32> to vector<128x256xf32>
    %cst = arith.constant dense<0.000000e+00> : vector<16x256xf32>
    %8 = tpu.matmul %5, %7, %cst {dimension_numbers = #tpu.dot_dimension_numbers<[1], [0], [0], [1], [0, 0, 1, 1], [], []>} : vector<16x128xf32>, vector<128x256xf32>, vector<16x256xf32> -> vector<16x256xf32>
    %9 = vector.extract_strided_slice %4 {offsets = [2, 0], sizes = [16, 128], strides = [1, 1]} : vector<20x128xf32> to vector<16x128xf32>
    %c1 = arith.constant 1 : index
    %c0_4 = arith.constant 0 : index
    %c0_5 = arith.constant 0 : index
    %10 = vector.load %arg3[%c1, %c0_4, %c0_5] : memref<3x128x256xf32, #tpu.memory_space<vmem>>, vector<1x128x256xf32>
    %11 = vector.shape_cast %10 : vector<1x128x256xf32> to vector<128x256xf32>
    %cst_6 = arith.constant dense<0.000000e+00> : vector<16x256xf32>
    %12 = tpu.matmul %9, %11, %cst_6 {dimension_numbers = #tpu.dot_dimension_numbers<[1], [0], [0], [1], [0, 0, 1, 1], [], []>} : vector<16x128xf32>, vector<128x256xf32>, vector<16x256xf32> -> vector<16x256xf32>
    %13 = arith.addf %8, %12 : vector<16x256xf32>
    %14 = vector.extract_strided_slice %4 {offsets = [4, 0], sizes = [16, 128], strides = [1, 1]} : vector<20x128xf32> to vector<16x128xf32>
    %c2 = arith.constant 2 : index
    %c0_7 = arith.constant 0 : index
    %c0_8 = arith.constant 0 : index
    %15 = vector.load %arg3[%c2, %c0_7, %c0_8] : memref<3x128x256xf32, #tpu.memory_space<vmem>>, vector<1x128x256xf32>
    %16 = vector.shape_cast %15 : vector<1x128x256xf32> to vector<128x256xf32>
    %cst_9 = arith.constant dense<0.000000e+00> : vector<16x256xf32>
    %17 = tpu.matmul %14, %16, %cst_9 {dimension_numbers = #tpu.dot_dimension_numbers<[1], [0], [0], [1], [0, 0, 1, 1], [], []>} : vector<16x128xf32>, vector<128x256xf32>, vector<16x256xf32> -> vector<16x256xf32>
    %18 = arith.addf %13, %17 : vector<16x256xf32>
    %19 = vector.extract_strided_slice %18 {offsets = [0, 0], sizes = [16, 128], strides = [1, 1]} : vector<16x256xf32> to vector<16x128xf32>
    %20 = math.tanh %19 : vector<16x128xf32>
    %21 = vector.extract_strided_slice %18 {offsets = [0, 128], sizes = [16, 128], strides = [1, 1]} : vector<16x256xf32> to vector<16x128xf32>
    %22 = arith.negf %21 : vector<16x128xf32>
    %23 = math.exp %22 : vector<16x128xf32>
    %cst_10 = arith.constant 1.000000e+00 : f32
    %24 = vector.broadcast %cst_10 : f32 to vector<16x128xf32>
    %25 = arith.addf %24, %23 : vector<16x128xf32>
    %26 = arith.divf %24, %25 : vector<16x128xf32>
    %27 = arith.mulf %20, %26 : vector<16x128xf32>
    %c0_11 = arith.constant 0 : index
    %c0_12 = arith.constant 0 : index
    %28 = vector.load %arg4[%c0_11, %c0_12] : memref<128x256xf32, #tpu.memory_space<vmem>>, vector<128x256xf32>
    %cst_13 = arith.constant dense<0.000000e+00> : vector<16x256xf32>
    %29 = tpu.matmul %27, %28, %cst_13 {dimension_numbers = #tpu.dot_dimension_numbers<[1], [0], [0], [1], [0, 0, 1, 1], [], []>} : vector<16x128xf32>, vector<128x256xf32>, vector<16x256xf32> -> vector<16x256xf32>
    %30 = vector.extract_strided_slice %4 {offsets = [2, 0], sizes = [16, 128], strides = [1, 1]} : vector<20x128xf32> to vector<16x128xf32>
    %31 = vector.extract_strided_slice %29 {offsets = [0, 0], sizes = [16, 128], strides = [1, 1]} : vector<16x256xf32> to vector<16x128xf32>
    %32 = arith.addf %31, %30 : vector<16x128xf32>
    %c0_14 = arith.constant 0 : index
    %c0_15 = arith.constant 0 : index
    %c0_16 = arith.constant 0 : index
    %33 = vector.load %arg5[%c0_14, %c0_15, %c0_16] : memref<1x16x256xf32, #tpu.memory_space<vmem>>, vector<1x16x128xf32>
    %34 = vector.shape_cast %33 : vector<1x16x128xf32> to vector<16x128xf32>
    %35 = vector.shape_cast %32 : vector<16x128xf32> to vector<1x16x128xf32>
    tpu.vector_store %arg5[%c0_14, %c0_15, %c0_16], %35 {strides = array<i32>} : memref<1x16x256xf32, #tpu.memory_space<vmem>>, vector<1x16x128xf32>,
    %36 = vector.extract_strided_slice %29 {offsets = [0, 128], sizes = [16, 128], strides = [1, 1]} : vector<16x256xf32> to vector<16x128xf32>
    %c0_17 = arith.constant 0 : index
    %c0_18 = arith.constant 0 : index
    %c128 = arith.constant 128 : index
    %37 = vector.load %arg5[%c0_17, %c0_18, %c128] : memref<1x16x256xf32, #tpu.memory_space<vmem>>, vector<1x16x128xf32>
    %38 = vector.shape_cast %37 : vector<1x16x128xf32> to vector<16x128xf32>
    %39 = vector.shape_cast %36 : vector<16x128xf32> to vector<1x16x128xf32>
    tpu.vector_store %arg5[%c0_17, %c0_18, %c128], %39 {strides = array<i32>} : memref<1x16x256xf32, #tpu.memory_space<vmem>>, vector<1x16x128xf32>,
    return
  }
  func.func @transform_0(%arg0: i32, %arg1: i32) -> (i32, i32, i32) {
    %c0_i32 = arith.constant 0 : i32
    %c0_i32_0 = arith.constant 0 : i32
    %c0_i32_1 = arith.constant 0 : i32
    return %arg0, %c0_i32, %c0_i32_0 : i32, i32, i32
  }
  func.func @transform_1(%arg0: i32, %arg1: i32) -> (i32, i32, i32) {
    %c0_i32 = arith.constant 0 : i32
    %c0_i32_0 = arith.constant 0 : i32
    %c0_i32_1 = arith.constant 0 : i32
    %c0_i32_2 = arith.constant 0 : i32
    return %c0_i32, %c0_i32_0, %c0_i32_1 : i32, i32, i32
  }
  func.func @transform_2(%arg0: i32, %arg1: i32) -> (i32, i32) {
    %c0_i32 = arith.constant 0 : i32
    %c0_i32_0 = arith.constant 0 : i32
    %c0_i32_1 = arith.constant 0 : i32
    return %c0_i32, %c0_i32_0 : i32, i32
  }
  func.func @transform_3(%arg0: i32, %arg1: i32) -> (i32, i32, i32) {
    %c0_i32 = arith.constant 0 : i32
    %c0_i32_0 = arith.constant 0 : i32
    return %arg0, %arg1, %c0_i32 : i32, i32, i32
  }
}

</mosaic_0001>

<llo_original>
// kernel: tpu_custom_call.1
$region0: #{tpu_custom_call.1}
  #allocation0 [shape = 'u32[]', space=smem, size = 0x4, offset = 0x4, fixed_abs, tag = 'smem constant byte address 0x4 - core index']
  #allocation1 [shape = 'u32[144,128]{1,0:T(1,128)}', space=vmem, size = 0x12000, scoped, tag = 'internal scratch']
  %s0 = inlined_call_operand.hbm [shape: f32[2,68,128], index: 0, kind: input, shape index: {}]
  %s1 = inlined_call_operand.hbm [shape: f32[3,128,256], index: 1, kind: input, shape index: {}]
  %s2 = inlined_call_operand.hbm [shape: f32[128,256], index: 2, kind: input, shape index: {}]
  %s3 = inlined_call_operand.hbm [shape: f32[2,64,256], index: 3, kind: output, shape index: {}]
  %s4 = sld [smem:[#allocation0]]
  $region57: #{tpu_custom_call.1} parent=0
    _
  %s6 = ssub.s32 1, %s4
  %s7 = scalar_select 0, %s6, %s4
  $region1: #{tpu_custom_call.1} parent=0
    #allocation2 [shape = 'u8[73728]{0}', space=vmem, size = 0x12000, scoped, tag = 'input window, operand 0']
    #allocation3 [shape = 's32[2]{0}', space=sflag, size = 0x8, scoped, tag = 'scoped memory for tpu_custom_call.1']
    #allocation4 [shape = 's32[2]{0}', space=sflag, size = 0x8, scoped, tag = 'scoped memory for tpu_custom_call.1']
    #allocation5 [shape = 'u8[393216]{0}', space=vmem, size = 0x60000, scoped, tag = 'input window, operand 1, single buffered']
    #allocation6 [shape = 's32[1]{0}', space=sflag, size = 0x4, scoped, tag = 'scoped memory for tpu_custom_call.1']
    #allocation7 [shape = 'u8[131072]{0}', space=vmem, size = 0x20000, scoped, tag = 'input window, operand 2, single buffered']
    #allocation8 [shape = 'u8[32768]{0}', space=vmem, size = 0x8000, scoped, tag = 'output window, operand 0']
    %8 = vsyncpa [#allocation3], 0
    %s9 = scalar_lea.sflag [#allocation3], 1
    %10 = vsyncpa %s9, 0
    %11 = vsyncpa [#allocation6], 0
    %12 = vsyncpa [#allocation4], 0
    %s13 = scalar_lea.sflag [#allocation4], 1
    %14 = vsyncpa %s13, 0
    loop: start=0, step=1, limit=10
    $region2: #{tpu_custom_call.1} parent=1 // loop_pre_header
      _
    $region3: #{tpu_custom_call.1} parent=1 // loop_header
      %s16 = sphi 0, %s20
      %p17 = scmp.ge.s32.totalorder %s16, 10
      %s23 = sphi 0, %s35
      %s24 = sphi 0, %s31
      %s25 = sphi 0, %s23
      %s26 = sphi 0, %s24
      %s27 = sphi 0, %s25
      %s28 = sphi 0, %s26
      %s38 = sphi 0, %s40
      %s41 = sphi 0, %s38
      %s42 = sphi 0, %s41
      %s58 = sphi 0, %s42
      %s62 = sphi 0, %s62
      %s64 = sphi 0, %s62
      %s65 = sphi 0, %s64
      %s79 = sphi 0, %s65
      %s83 = sphi 0, %s83
      %s85 = sphi 0, %s83
      %s86 = sphi 0, %s85
      %s100 = sphi 0, %s86
      %s108 = sphi 0, %s110
      %s111 = sphi 0, %s108
      %s112 = sphi 0, %s111
      %s128 = sphi 0, %s112
    $region4: #{tpu_custom_call.1} parent=1 // loop_header_branch
      %19 = sbr.rel (%p17) target = $region8
    $region5: #{tpu_custom_call.1} parent=1 // loop_body
      %s21 = ssub.s32 %s16, 1
      %s22 = ssub.s32 %s16, 2
      %s29 = sadd.s32 1, %s24
      %p30 = scmp.ge.s32.totalorder %s29, 4
      %s31 = scalar_select %p30, 0, %s29
      %s32 = sadd.s32 1, %s23
      %s33 = scalar_select %p30, %s32, %s23
      %p34 = scmp.ge.s32.totalorder %s33, 2
      %s35 = scalar_select %p34, 0, %s33
      %s36 = ssub.s32 %s23, %s35
      %p37 = scmp.eq.s32.totalorder %s36, 0
      %s39 = sadd.s32 %s38, 1
      %s40 = scalar_select %p37, %s38, %s39
      %p43 = pneg %p37
      %p44 = scmp.eq.s32.totalorder %s16, 7
      %p45 = por %p43, %p44
      %p46 = scmp.ne.s32.totalorder %s38, %s41
      %p47 = scmp.eq.s32.totalorder %s16, 0
      %p48 = por %p46, %p47
      %p49 = scmp.ne.s32.totalorder %s38, %s41
      %p50 = scmp.eq.s32.totalorder %s21, 7
      %p51 = por %p49, %p50
      %p52 = scmp.ne.s32.totalorder %s41, %s42
      %p53 = scmp.eq.s32.totalorder %s21, 0
      %p54 = por %p52, %p53
      %p55 = scmp.ne.s32.totalorder %s41, %s42
      %p56 = scmp.eq.s32.totalorder %s22, 7
      %p57 = por %p55, %p56
      %p59 = scmp.ne.s32.totalorder %s42, %s58
      %p60 = scmp.eq.s32.totalorder %s22, 0
      %p61 = por %p59, %p60
      %s63 = sadd.s32 %s62, 1
      %p66 = scmp.eq.s32.totalorder %s16, 7
      %p67 = scmp.ne.s32.totalorder %s62, %s64
      %p68 = scmp.eq.s32.totalorder %s16, 0
      %p69 = por %p67, %p68
      %p70 = scmp.ne.s32.totalorder %s62, %s64
      %p71 = scmp.eq.s32.totalorder %s21, 7
      %p72 = por %p70, %p71
      %p73 = scmp.ne.s32.totalorder %s64, %s65
      %p74 = scmp.eq.s32.totalorder %s21, 0
      %p75 = por %p73, %p74
      %p76 = scmp.ne.s32.totalorder %s64, %s65
      %p77 = scmp.eq.s32.totalorder %s22, 7
      %p78 = por %p76, %p77
      %p80 = scmp.ne.s32.totalorder %s65, %s79
      %p81 = scmp.eq.s32.totalorder %s22, 0
      %p82 = por %p80, %p81
      %s84 = sadd.s32 %s83, 1
      %p87 = scmp.eq.s32.totalorder %s16, 7
      %p88 = scmp.ne.s32.totalorder %s83, %s85
      %p89 = scmp.eq.s32.totalorder %s16, 0
      %p90 = por %p88, %p89
      %p91 = scmp.ne.s32.totalorder %s83, %s85
      %p92 = scmp.eq.s32.totalorder %s21, 7
      %p93 = por %p91, %p92
      %p94 = scmp.ne.s32.totalorder %s85, %s86
      %p95 = scmp.eq.s32.totalorder %s21, 0
      %p96 = por %p94, %p95
      %p97 = scmp.ne.s32.totalorder %s85, %s86
      %p98 = scmp.eq.s32.totalorder %s22, 7
      %p99 = por %p97, %p98
      %p101 = scmp.ne.s32.totalorder %s86, %s100
      %p102 = scmp.eq.s32.totalorder %s22, 0
      %p103 = por %p101, %p102
      %s104 = ssub.s32 %s23, %s35
      %s105 = ssub.s32 %s24, %s31
      %s106 = sor.u32 %s104, %s105
      %p107 = scmp.eq.s32.totalorder %s106, 0
      %s109 = sadd.s32 %s108, 1
      %s110 = scalar_select %p107, %s108, %s109
      %p113 = pneg %p107
      %p114 = scmp.eq.s32.totalorder %s16, 7
      %p115 = por %p113, %p114
      %p116 = scmp.ne.s32.totalorder %s108, %s111
      %p117 = scmp.eq.s32.totalorder %s16, 0
      %p118 = por %p116, %p117
      %p119 = scmp.ne.s32.totalorder %s108, %s111
      %p120 = scmp.eq.s32.totalorder %s21, 7
      %p121 = por %p119, %p120
      %p122 = scmp.ne.s32.totalorder %s111, %s112
      %p123 = scmp.eq.s32.totalorder %s21, 0
      %p124 = por %p122, %p123
      %p125 = scmp.ne.s32.totalorder %s111, %s112
      %p126 = scmp.eq.s32.totalorder %s22, 7
      %p127 = por %p125, %p126
      %p129 = scmp.ne.s32.totalorder %s112, %s128
      %p130 = scmp.eq.s32.totalorder %s22, 0
      %p131 = por %p129, %p130
      %p132 = scmp.le.s32.totalorder 1, %s16
      %p133 = scmp.lt.s32.totalorder %s16, 9
      %p134 = pnand %p132, %p133
      %p135 = pneg %p134
      // Predicated region
      $region9: #{tpu_custom_call.1} parent=5 // pred_check
        _
      $region10: #{tpu_custom_call.1} parent=5 // pred_check_branch
        %137 = sbr.rel (%p134) target = $region12
      $region11: #{tpu_custom_call.1} parent=5 // pred_region
        %s138 = ssub.s32 %s16, 1
        // Predicated region
        $region13: #{tpu_custom_call.1} parent=11 // pred_check
          %p139 = pneg %p75
        $region14: #{tpu_custom_call.1} parent=11 // pred_check_branch
          %141 = sbr.rel (%p139) target = $region16
        $region15: #{tpu_custom_call.1} parent=11 // pred_region
          %s143 = ssub.s32 12288, 12288
          %144 = vsyncadd [#allocation6], %s143
          %s145 = sshll.u32 [#allocation5], 4
          %s146 = int_to_ptr.vmem [resolvable:$true] %s145
          %151 = dma.hbm_to_vmem [thread:$0]  %s1, 12288, %s146, [#allocation6], 256, 256, 16
        $region16: #{tpu_custom_call.1} parent=11 // pred_fallthru
          _
        // Predicated region
        $region17: #{tpu_custom_call.1} parent=11 // pred_check
          %p152 = pneg %p96
        $region18: #{tpu_custom_call.1} parent=11 // pred_check_branch
          %154 = sbr.rel (%p152) target = $region20
        $region19: #{tpu_custom_call.1} parent=11 // pred_region
          %s156 = ssub.s32 4096, 4096
          %157 = vsyncadd [#allocation6], %s156
          %s158 = sshll.u32 [#allocation7], 4
          %s159 = int_to_ptr.vmem [resolvable:$true] %s158
          %164 = dma.hbm_to_vmem [thread:$0]  %s2, 4096, %s159, [#allocation6], 256, 256, 16
        $region20: #{tpu_custom_call.1} parent=11 // pred_fallthru
          _
      $region12: #{tpu_custom_call.1} parent=5 // pred_fallthru
        _
      %p165 = scmp.lt.s32.totalorder %s16, 8
      // Predicated region
      $region21: #{tpu_custom_call.1} parent=5 // pred_check
        %p166 = pneg %p165
      $region22: #{tpu_custom_call.1} parent=5 // pred_check_branch
        %168 = sbr.rel (%p166) target = $region24
      $region23: #{tpu_custom_call.1} parent=5 // pred_region
        // Predicated region
        $region25: #{tpu_custom_call.1} parent=23 // pred_check
          %p169 = pneg %p48
        $region26: #{tpu_custom_call.1} parent=23 // pred_check_branch
          %171 = sbr.rel (%p169) target = $region28
        $region27: #{tpu_custom_call.1} parent=23 // pred_region
          %s172 = sand.u32 %s38, 1
          %s173 = scalar_lea.sflag [#allocation3], %s172
          %s174 = sand.u32 %s38, 1
          %s175 = smul.addr %s174, 72
          %s176 = scalar_lea.vmem [#allocation2], %s175
          %s178 = ssub.s32 1152, 1152
          %179 = vsyncadd %s173, %s178
          %s180 = smul.addr %s23, 9
          %s181 = smul.addr %s180, 128
          %s182 = scalar_lea.hbm %s0, %s181
          %s183 = sshll.u32 %s176, 4
          %s184 = int_to_ptr.vmem [resolvable:$true] %s183
          %189 = dma.hbm_to_vmem [thread:$0]  %s182, 1152, %s184, %s173, 128, 128, 8
        $region28: #{tpu_custom_call.1} parent=23 // pred_fallthru
          _
      $region24: #{tpu_custom_call.1} parent=5 // pred_fallthru
        _
      %p190 = scmp.le.s32.totalorder 1, %s16
      %p191 = scmp.lt.s32.totalorder %s16, 9
      %p192 = pnand %p190, %p191
      %p193 = pneg %p192
      // Predicated region
      $region29: #{tpu_custom_call.1} parent=5 // pred_check
        _
      $region30: #{tpu_custom_call.1} parent=5 // pred_check_branch
        %195 = sbr.rel (%p192) target = $region32
      $region31: #{tpu_custom_call.1} parent=5 // pred_region
        %s196 = ssub.s32 %s16, 1
        %s197 = sand.u32 %s41, 1
        %s198 = scalar_lea.sflag [#allocation3], %s197
        %s199 = sand.u32 %s41, 1
        %s200 = smul.addr %s199, 72
        %s201 = scalar_lea.vmem [#allocation2], %s200
        // Predicated region
        $region33: #{tpu_custom_call.1} parent=31 // pred_check
          %p202 = pneg %p54
        $region34: #{tpu_custom_call.1} parent=31 // pred_check_branch
          %204 = sbr.rel (%p202) target = $region36
        $region35: #{tpu_custom_call.1} parent=31 // pred_region
          %205 = dma.done %s198, 1152
        $region36: #{tpu_custom_call.1} parent=31 // pred_fallthru
          _
        // Predicated region
        $region37: #{tpu_custom_call.1} parent=31 // pred_check
          %p206 = pneg %p75
        $region38: #{tpu_custom_call.1} parent=31 // pred_check_branch
          %208 = sbr.rel (%p206) target = $region40
        $region39: #{tpu_custom_call.1} parent=31 // pred_region
          %209 = dma.done [#allocation6], 12288
        $region40: #{tpu_custom_call.1} parent=31 // pred_fallthru
          _
        // Predicated region
        $region41: #{tpu_custom_call.1} parent=31 // pred_check
          %p210 = pneg %p96
        $region42: #{tpu_custom_call.1} parent=31 // pred_check_branch
          %212 = sbr.rel (%p210) target = $region44
        $region43: #{tpu_custom_call.1} parent=31 // pred_region
          %213 = dma.done [#allocation6], 4096
        $region44: #{tpu_custom_call.1} parent=31 // pred_fallthru
          _
        %s214 = sand.u32 %s41, 1
        %s215 = scalar_lea.sflag [#allocation3], %s214
        %s216 = sand.u32 %s41, 1
        %s217 = smul.addr %s216, 72
        %s218 = scalar_lea.vmem [#allocation2], %s217
        %p219 = pneg %p54
        %p220 = pneg %p51
        %p221 = pneg %p75
        %p222 = pneg %p72
        %p223 = pneg %p96
        %p224 = pneg %p93
        %p225 = pneg %p124
        %p226 = pneg %p121
        %s227 = sand.u32 %s111, 1
        %s228 = scalar_lea.sflag [#allocation4], %s227
        %s229 = sand.u32 %s111, 1
        %s230 = smul.addr %s229, 32
        %s231 = scalar_lea.vmem [#allocation8], %s230
        %s232 = smul.u32 2, %s26
        %s233 = smul.u32 %s26, 16
        %s234 = scalar_lea.vmem %s201, %s233 [#allocation2]
        %v235 = vld [vmem:[%s234] sm:$0xff]
        %v236 = vld [vmem:[%s234 + $0x8] sm:$0xff]
        %v237 = vld [vmem:[%s234 + $0x10] sm:$0xf]
        %v238 = vld [vmem:[#allocation5] sm:$0xff]
        %v239 = vld [vmem:[#allocation5 + $0x8] sm:$0xff]
        %v240 = vld [vmem:[#allocation5 + $0x10] sm:$0xff]
        %v241 = vld [vmem:[#allocation5 + $0x18] sm:$0xff]
        %v242 = vld [vmem:[#allocation5 + $0x20] sm:$0xff]
        %v243 = vld [vmem:[#allocation5 + $0x28] sm:$0xff]
        %v244 = vld [vmem:[#allocation5 + $0x30] sm:$0xff]
        %v245 = vld [vmem:[#allocation5 + $0x38] sm:$0xff]
        %v246 = vld [vmem:[#allocation5 + $0x40] sm:$0xff]
        %v247 = vld [vmem:[#allocation5 + $0x48] sm:$0xff]
        %v248 = vld [vmem:[#allocation5 + $0x50] sm:$0xff]
        %v249 = vld [vmem:[#allocation5 + $0x58] sm:$0xff]
        %v250 = vld [vmem:[#allocation5 + $0x60] sm:$0xff]
        %v251 = vld [vmem:[#allocation5 + $0x68] sm:$0xff]
        %v252 = vld [vmem:[#allocation5 + $0x70] sm:$0xff]
        %v253 = vld [vmem:[#allocation5 + $0x78] sm:$0xff]
        %v254 = vld [vmem:[#allocation5 + $0x80] sm:$0xff]
        %v255 = vld [vmem:[#allocation5 + $0x88] sm:$0xff]
        %v256 = vld [vmem:[#allocation5 + $0x90] sm:$0xff]
        %v257 = vld [vmem:[#allocation5 + $0x98] sm:$0xff]
        %v258 = vld [vmem:[#allocation5 + $0xa0] sm:$0xff]
        %v259 = vld [vmem:[#allocation5 + $0xa8] sm:$0xff]
        %v260 = vld [vmem:[#allocation5 + $0xb0] sm:$0xff]
        %v261 = vld [vmem:[#allocation5 + $0xb8] sm:$0xff]
        %v262 = vld [vmem:[#allocation5 + $0xc0] sm:$0xff]
        %v263 = vld [vmem:[#allocation5 + $0xc8] sm:$0xff]
        %v264 = vld [vmem:[#allocation5 + $0xd0] sm:$0xff]
        %v265 = vld [vmem:[#allocation5 + $0xd8] sm:$0xff]
        %v266 = vld [vmem:[#allocation5 + $0xe0] sm:$0xff]
        %v267 = vld [vmem:[#allocation5 + $0xe8] sm:$0xff]
        %v268 = vld [vmem:[#allocation5 + $0xf0] sm:$0xff]
        %v269 = vld [vmem:[#allocation5 + $0xf8] sm:$0xff]
        %s270 = scalar_lea.vmem [#allocation5], 256
        %v271 = vld [vmem:[%s270] sm:$0xff]
        %v272 = vld [vmem:[%s270 + $0x8] sm:$0xff]
        %v273 = vld [vmem:[%s270 + $0x10] sm:$0xff]
        %v274 = vld [vmem:[%s270 + $0x18] sm:$0xff]
        %v275 = vld [vmem:[%s270 + $0x20] sm:$0xff]
        %v276 = vld [vmem:[%s270 + $0x28] sm:$0xff]
        %v277 = vld [vmem:[%s270 + $0x30] sm:$0xff]
        %v278 = vld [vmem:[%s270 + $0x38] sm:$0xff]
        %v279 = vld [vmem:[%s270 + $0x40] sm:$0xff]
        %v280 = vld [vmem:[%s270 + $0x48] sm:$0xff]
        %v281 = vld [vmem:[%s270 + $0x50] sm:$0xff]
        %v282 = vld [vmem:[%s270 + $0x58] sm:$0xff]
        %v283 = vld [vmem:[%s270 + $0x60] sm:$0xff]
        %v284 = vld [vmem:[%s270 + $0x68] sm:$0xff]
        %v285 = vld [vmem:[%s270 + $0x70] sm:$0xff]
        %v286 = vld [vmem:[%s270 + $0x78] sm:$0xff]
        %v287 = vld [vmem:[%s270 + $0x80] sm:$0xff]
        %v288 = vld [vmem:[%s270 + $0x88] sm:$0xff]
        %v289 = vld [vmem:[%s270 + $0x90] sm:$0xff]
        %v290 = vld [vmem:[%s270 + $0x98] sm:$0xff]
        %v291 = vld [vmem:[%s270 + $0xa0] sm:$0xff]
        %v292 = vld [vmem:[%s270 + $0xa8] sm:$0xff]
        %v293 = vld [vmem:[%s270 + $0xb0] sm:$0xff]
        %v294 = vld [vmem:[%s270 + $0xb8] sm:$0xff]
        %v295 = vld [vmem:[%s270 + $0xc0] sm:$0xff]
        %v296 = vld [vmem:[%s270 + $0xc8] sm:$0xff]
        %v297 = vld [vmem:[%s270 + $0xd0] sm:$0xff]
        %v298 = vld [vmem:[%s270 + $0xd8] sm:$0xff]
        %v299 = vld [vmem:[%s270 + $0xe0] sm:$0xff]
        %v300 = vld [vmem:[%s270 + $0xe8] sm:$0xff]
        %v301 = vld [vmem:[%s270 + $0xf0] sm:$0xff]
        %v302 = vld [vmem:[%s270 + $0xf8] sm:$0xff]
        %vm306 = vcmask 1045504
        %v307 = vrot.slane %v235, 2
        %v308 = vrot.slane %v236, 2
        %v309 = vsel %vm306, %v307, %v308
        %v310 = vrot.slane %v237, 2
        %v311 = vsel %vm306, %v308, %v310
        %314 = vmatprep.subr.mxu0 %v272
        %315 = vmatpush1.msra.mxu0 %v271
        %316 = vmatprep.subr.mxu0 %v274
        %317 = vmatpush1.msra.mxu0 %v273
        %318 = vmatprep.subr.mxu0 %v276
        %319 = vmatpush1.msra.mxu0 %v275
        %320 = vmatprep.subr.mxu0 %v278
        %321 = vmatpush1.msra.mxu0 %v277
        %322 = vmatprep.subr.mxu0 %v280
        %323 = vmatpush1.msra.mxu0 %v279
        %324 = vmatprep.subr.mxu0 %v282
        %325 = vmatpush1.msra.mxu0 %v281
        %326 = vmatprep.subr.mxu0 %v284
        %327 = vmatpush1.msra.mxu0 %v283
        %328 = vmatprep.subr.mxu0 %v286
        %329 = vmatpush1.msra.mxu0 %v285
        %330 = vmatprep.subr.mxu0 %v288
        %331 = vmatpush1.msra.mxu0 %v287
        %332 = vmatprep.subr.mxu0 %v290
        %333 = vmatpush1.msra.mxu0 %v289
        %334 = vmatprep.subr.mxu0 %v292
        %335 = vmatpush1.msra.mxu0 %v291
        %336 = vmatprep.subr.mxu0 %v294
        %337 = vmatpush1.msra.mxu0 %v293
        %338 = vmatprep.subr.mxu0 %v296
        %339 = vmatpush1.msra.mxu0 %v295
        %340 = vmatprep.subr.mxu0 %v298
        %341 = vmatpush1.msra.mxu0 %v297
        %342 = vmatprep.subr.mxu0 %v300
        %343 = vmatpush1.msra.mxu0 %v299
        %344 = vmatprep.subr.mxu0 %v302
        %345 = vmatpush1.msra.mxu0 %v301
        %346 = vmatprep.subr.mxu0 0.0
        %347 = vmatpush1.msra.mxu0 0.0
        %348 = vmatprep.subr.mxu0 0.0
        %349 = vmatpush1.msra.mxu0 0.0
        %350 = vmatprep.subr.mxu0 0.0
        %351 = vmatpush1.msra.mxu0 0.0
        %352 = vmatprep.subr.mxu0 0.0
        %353 = vmatpush1.msra.mxu0 0.0
        %354 = vmatprep.subr.mxu0 0.0
        %355 = vmatpush1.msra.mxu0 0.0
        %356 = vmatprep.subr.mxu0 0.0
        %357 = vmatpush1.msra.mxu0 0.0
        %358 = vmatprep.subr.mxu0 0.0
        %359 = vmatpush1.msra.mxu0 0.0
        %360 = vmatprep.subr.mxu0 0.0
        %361 = vmatpush1.msra.mxu0 0.0
        %362 = vmatprep.subr.mxu0 0.0
        %363 = vmatpush1.msra.mxu0 0.0
        %364 = vmatprep.subr.mxu0 0.0
        %365 = vmatpush1.msra.mxu0 0.0
        %366 = vmatprep.subr.mxu0 0.0
        %367 = vmatpush1.msra.mxu0 0.0
        %368 = vmatprep.subr.mxu0 0.0
        %369 = vmatpush1.msra.mxu0 0.0
        %370 = vmatprep.subr.mxu0 0.0
        %371 = vmatpush1.msra.mxu0 0.0
        %372 = vmatprep.subr.mxu0 0.0
        %373 = vmatpush1.msra.mxu0 0.0
        %374 = vmatprep.subr.mxu0 0.0
        %375 = vmatpush1.msra.mxu0 0.0
        %376 = vmatprep.subr.mxu0 0.0
        %377 = vmatpush1.msra.mxu0 0.0
        %378 = vmatprep.mubr.f32.mxu0 0.0
        %379 = vmatmul.mubr.f32.gmra.mrb[0].mxu0 %v309
        %v380 = vpop.f32.mrb[0].mxu0
        %v381 = vadd.f32 0.0, %v380
        %v382 = vpop.f32.mrb[0].mxu0
        %v383 = vadd.f32 0.0, %v382
        %384 = vmatprep.mubr.f32.mxu0 0.0
        %385 = vmatmul.mubr.f32.gmra.mrb[0].mxu0 %v311
        %v386 = vpop.f32.mrb[0].mxu0
        %v387 = vadd.f32 0.0, %v386
        %v388 = vpop.f32.mrb[0].mxu0
        %v389 = vadd.f32 0.0, %v388
        %390 = vdwg.mxu0
        %391 = vmatprep.subr.mxu0 %v239
        %392 = vmatpush1.msra.mxu0 %v238
        %393 = vmatprep.subr.mxu0 %v241
        %394 = vmatpush1.msra.mxu0 %v240
        %395 = vmatprep.subr.mxu0 %v243
        %396 = vmatpush1.msra.mxu0 %v242
        %397 = vmatprep.subr.mxu0 %v245
        %398 = vmatpush1.msra.mxu0 %v244
        %399 = vmatprep.subr.mxu0 %v247
        %400 = vmatpush1.msra.mxu0 %v246
        %401 = vmatprep.subr.mxu0 %v249
        %402 = vmatpush1.msra.mxu0 %v248
        %403 = vmatprep.subr.mxu0 %v251
        %404 = vmatpush1.msra.mxu0 %v250
        %405 = vmatprep.subr.mxu0 %v253
        %406 = vmatpush1.msra.mxu0 %v252
        %407 = vmatprep.subr.mxu0 %v255
        %408 = vmatpush1.msra.mxu0 %v254
        %409 = vmatprep.subr.mxu0 %v257
        %410 = vmatpush1.msra.mxu0 %v256
        %411 = vmatprep.subr.mxu0 %v259
        %412 = vmatpush1.msra.mxu0 %v258
        %413 = vmatprep.subr.mxu0 %v261
        %414 = vmatpush1.msra.mxu0 %v260
        %415 = vmatprep.subr.mxu0 %v263
        %416 = vmatpush1.msra.mxu0 %v262
        %417 = vmatprep.subr.mxu0 %v265
        %418 = vmatpush1.msra.mxu0 %v264
        %419 = vmatprep.subr.mxu0 %v267
        %420 = vmatpush1.msra.mxu0 %v266
        %421 = vmatprep.subr.mxu0 %v269
        %422 = vmatpush1.msra.mxu0 %v268
        %423 = vmatprep.subr.mxu0 0.0
        %424 = vmatpush1.msra.mxu0 0.0
        %425 = vmatprep.subr.mxu0 0.0
        %426 = vmatpush1.msra.mxu0 0.0
        %427 = vmatprep.subr.mxu0 0.0
        %428 = vmatpush1.msra.mxu0 0.0
        %429 = vmatprep.subr.mxu0 0.0
        %430 = vmatpush1.msra.mxu0 0.0
        %431 = vmatprep.subr.mxu0 0.0
        %432 = vmatpush1.msra.mxu0 0.0
        %433 = vmatprep.subr.mxu0 0.0
        %434 = vmatpush1.msra.mxu0 0.0
        %435 = vmatprep.subr.mxu0 0.0
        %436 = vmatpush1.msra.mxu0 0.0
        %437 = vmatprep.subr.mxu0 0.0
        %438 = vmatpush1.msra.mxu0 0.0
        %439 = vmatprep.subr.mxu0 0.0
        %440 = vmatpush1.msra.mxu0 0.0
        %441 = vmatprep.subr.mxu0 0.0
        %442 = vmatpush1.msra.mxu0 0.0
        %443 = vmatprep.subr.mxu0 0.0
        %444 = vmatpush1.msra.mxu0 0.0
        %445 = vmatprep.subr.mxu0 0.0
        %446 = vmatpush1.msra.mxu0 0.0
        %447 = vmatprep.subr.mxu0 0.0
        %448 = vmatpush1.msra.mxu0 0.0
        %449 = vmatprep.subr.mxu0 0.0
        %450 = vmatpush1.msra.mxu0 0.0
        %451 = vmatprep.subr.mxu0 0.0
        %452 = vmatpush1.msra.mxu0 0.0
        %453 = vmatprep.subr.mxu0 0.0
        %454 = vmatpush1.msra.mxu0 0.0
        %455 = vmatprep.mubr.f32.mxu0 0.0
        %456 = vmatmul.mubr.f32.gmra.mrb[0].mxu0 %v235
        %v457 = vpop.f32.mrb[0].mxu0
        %v458 = vadd.f32 %v381, %v457
        %v459 = vpop.f32.mrb[0].mxu0
        %v460 = vadd.f32 %v383, %v459
        %461 = vmatprep.mubr.f32.mxu0 0.0
        %462 = vmatmul.mubr.f32.gmra.mrb[0].mxu0 %v236
        %v463 = vpop.f32.mrb[0].mxu0
        %v464 = vadd.f32 %v387, %v463
        %v465 = vpop.f32.mrb[0].mxu0
        %v466 = vadd.f32 %v389, %v465
        %467 = vdwg.mxu0
        %s468 = scalar_lea.vmem [#allocation5], 512
        %v469 = vld [vmem:[%s468] sm:$0xff]
        %v470 = vld [vmem:[%s468 + $0x8] sm:$0xff]
        %v471 = vld [vmem:[%s468 + $0x10] sm:$0xff]
        %v472 = vld [vmem:[%s468 + $0x18] sm:$0xff]
        %v473 = vld [vmem:[%s468 + $0x20] sm:$0xff]
        %v474 = vld [vmem:[%s468 + $0x28] sm:$0xff]
        %v475 = vld [vmem:[%s468 + $0x30] sm:$0xff]
        %v476 = vld [vmem:[%s468 + $0x38] sm:$0xff]
        %v477 = vld [vmem:[%s468 + $0x40] sm:$0xff]
        %v478 = vld [vmem:[%s468 + $0x48] sm:$0xff]
        %v479 = vld [vmem:[%s468 + $0x50] sm:$0xff]
        %v480 = vld [vmem:[%s468 + $0x58] sm:$0xff]
        %v481 = vld [vmem:[%s468 + $0x60] sm:$0xff]
        %v482 = vld [vmem:[%s468 + $0x68] sm:$0xff]
        %v483 = vld [vmem:[%s468 + $0x70] sm:$0xff]
        %v484 = vld [vmem:[%s468 + $0x78] sm:$0xff]
        %v485 = vld [vmem:[%s468 + $0x80] sm:$0xff]
        %v486 = vld [vmem:[%s468 + $0x88] sm:$0xff]
        %v487 = vld [vmem:[%s468 + $0x90] sm:$0xff]
        %v488 = vld [vmem:[%s468 + $0x98] sm:$0xff]
        %v489 = vld [vmem:[%s468 + $0xa0] sm:$0xff]
        %v490 = vld [vmem:[%s468 + $0xa8] sm:$0xff]
        %v491 = vld [vmem:[%s468 + $0xb0] sm:$0xff]
        %v492 = vld [vmem:[%s468 + $0xb8] sm:$0xff]
        %v493 = vld [vmem:[%s468 + $0xc0] sm:$0xff]
        %v494 = vld [vmem:[%s468 + $0xc8] sm:$0xff]
        %v495 = vld [vmem:[%s468 + $0xd0] sm:$0xff]
        %v496 = vld [vmem:[%s468 + $0xd8] sm:$0xff]
        %v497 = vld [vmem:[%s468 + $0xe0] sm:$0xff]
        %v498 = vld [vmem:[%s468 + $0xe8] sm:$0xff]
        %v499 = vld [vmem:[%s468 + $0xf0] sm:$0xff]
        %v500 = vld [vmem:[%s468 + $0xf8] sm:$0xff]
        %vm501 = vcmask 1043456
        %v502 = vrot.slane %v235, 4
        %v503 = vrot.slane %v236, 4
        %v504 = vsel %vm501, %v502, %v503
        %v505 = vrot.slane %v237, 4
        %v506 = vsel %vm501, %v503, %v505
        %509 = vmatprep.subr.mxu0 %v470
        %510 = vmatpush1.msra.mxu0 %v469
        %511 = vmatprep.subr.mxu0 %v472
        %512 = vmatpush1.msra.mxu0 %v471
        %513 = vmatprep.subr.mxu0 %v474
        %514 = vmatpush1.msra.mxu0 %v473
        %515 = vmatprep.subr.mxu0 %v476
        %516 = vmatpush1.msra.mxu0 %v475
        %517 = vmatprep.subr.mxu0 %v478
        %518 = vmatpush1.msra.mxu0 %v477
        %519 = vmatprep.subr.mxu0 %v480
        %520 = vmatpush1.msra.mxu0 %v479
        %521 = vmatprep.subr.mxu0 %v482
        %522 = vmatpush1.msra.mxu0 %v481
        %523 = vmatprep.subr.mxu0 %v484
        %524 = vmatpush1.msra.mxu0 %v483
        %525 = vmatprep.subr.mxu0 %v486
        %526 = vmatpush1.msra.mxu0 %v485
        %527 = vmatprep.subr.mxu0 %v488
        %528 = vmatpush1.msra.mxu0 %v487
        %529 = vmatprep.subr.mxu0 %v490
        %530 = vmatpush1.msra.mxu0 %v489
        %531 = vmatprep.subr.mxu0 %v492
        %532 = vmatpush1.msra.mxu0 %v491
        %533 = vmatprep.subr.mxu0 %v494
        %534 = vmatpush1.msra.mxu0 %v493
        %535 = vmatprep.subr.mxu0 %v496
        %536 = vmatpush1.msra.mxu0 %v495
        %537 = vmatprep.subr.mxu0 %v498
        %538 = vmatpush1.msra.mxu0 %v497
        %539 = vmatprep.subr.mxu0 %v500
        %540 = vmatpush1.msra.mxu0 %v499
        %541 = vmatprep.subr.mxu0 0.0
        %542 = vmatpush1.msra.mxu0 0.0
        %543 = vmatprep.subr.mxu0 0.0
        %544 = vmatpush1.msra.mxu0 0.0
        %545 = vmatprep.subr.mxu0 0.0
        %546 = vmatpush1.msra.mxu0 0.0
        %547 = vmatprep.subr.mxu0 0.0
        %548 = vmatpush1.msra.mxu0 0.0
        %549 = vmatprep.subr.mxu0 0.0
        %550 = vmatpush1.msra.mxu0 0.0
        %551 = vmatprep.subr.mxu0 0.0
        %552 = vmatpush1.msra.mxu0 0.0
        %553 = vmatprep.subr.mxu0 0.0
        %554 = vmatpush1.msra.mxu0 0.0
        %555 = vmatprep.subr.mxu0 0.0
        %556 = vmatpush1.msra.mxu0 0.0
        %557 = vmatprep.subr.mxu0 0.0
        %558 = vmatpush1.msra.mxu0 0.0
        %559 = vmatprep.subr.mxu0 0.0
        %560 = vmatpush1.msra.mxu0 0.0
        %561 = vmatprep.subr.mxu0 0.0
        %562 = vmatpush1.msra.mxu0 0.0
        %563 = vmatprep.subr.mxu0 0.0
        %564 = vmatpush1.msra.mxu0 0.0
        %565 = vmatprep.subr.mxu0 0.0
        %566 = vmatpush1.msra.mxu0 0.0
        %567 = vmatprep.subr.mxu0 0.0
        %568 = vmatpush1.msra.mxu0 0.0
        %569 = vmatprep.subr.mxu0 0.0
        %570 = vmatpush1.msra.mxu0 0.0
        %571 = vmatprep.subr.mxu0 0.0
        %572 = vmatpush1.msra.mxu0 0.0
        %573 = vmatprep.mubr.f32.mxu0 0.0
        %574 = vmatmul.mubr.f32.gmra.mrb[0].mxu0 %v504
        %v575 = vpop.f32.mrb[0].mxu0
        %v576 = vadd.f32 0.0, %v575
        %v577 = vpop.f32.mrb[0].mxu0
        %v578 = vadd.f32 0.0, %v577
        %579 = vmatprep.mubr.f32.mxu0 0.0
        %580 = vmatmul.mubr.f32.gmra.mrb[0].mxu0 %v506
        %v581 = vpop.f32.mrb[0].mxu0
        %v582 = vadd.f32 0.0, %v581
        %v583 = vpop.f32.mrb[0].mxu0
        %v584 = vadd.f32 0.0, %v583
        %585 = vdwg.mxu0
        %v586 = vadd.f32 %v458, %v576
        %v587 = vadd.f32 %v460, %v578
        %v588 = vadd.f32 %v464, %v582
        %v589 = vadd.f32 %v466, %v584
        %v590 = vtanh.pop %v586
        %v591 = vtanh.pop %v588
        %v592 = vxor.u32 %v587, 2147483648
        %v593 = vxor.u32 %v589, 2147483648
        %v594 = vmul.f32 %v592, 1.442695
        %v595 = vpow.pop %v594
        %v596 = vmul.f32 %v593, 1.442695
        %v597 = vpow.pop %v596
        %v598 = vadd.f32 %v595, 1.0
        %v599 = vadd.f32 %v597, 1.0
        %v600 = vrcp.pop %v598
        %v601 = vmul.f32 1.0, %v600
        %v602 = vrcp.pop %v599
        %v603 = vmul.f32 1.0, %v602
        %v604 = vmul.f32 %v590, %v601
        %v605 = vmul.f32 %v591, %v603
        %v606 = vld [vmem:[#allocation7] sm:$0xff]
        %v607 = vld [vmem:[#allocation7 + $0x8] sm:$0xff]
        %v608 = vld [vmem:[#allocation7 + $0x10] sm:$0xff]
        %v609 = vld [vmem:[#allocation7 + $0x18] sm:$0xff]
        %v610 = vld [vmem:[#allocation7 + $0x20] sm:$0xff]
        %v611 = vld [vmem:[#allocation7 + $0x28] sm:$0xff]
        %v612 = vld [vmem:[#allocation7 + $0x30] sm:$0xff]
        %v613 = vld [vmem:[#allocation7 + $0x38] sm:$0xff]
        %v614 = vld [vmem:[#allocation7 + $0x40] sm:$0xff]
        %v615 = vld [vmem:[#allocation7 + $0x48] sm:$0xff]
        %v616 = vld [vmem:[#allocation7 + $0x50] sm:$0xff]
        %v617 = vld [vmem:[#allocation7 + $0x58] sm:$0xff]
        %v618 = vld [vmem:[#allocation7 + $0x60] sm:$0xff]
        %v619 = vld [vmem:[#allocation7 + $0x68] sm:$0xff]
        %v620 = vld [vmem:[#allocation7 + $0x70] sm:$0xff]
        %v621 = vld [vmem:[#allocation7 + $0x78] sm:$0xff]
        %v622 = vld [vmem:[#allocation7 + $0x80] sm:$0xff]
        %v623 = vld [vmem:[#allocation7 + $0x88] sm:$0xff]
        %v624 = vld [vmem:[#allocation7 + $0x90] sm:$0xff]
        %v625 = vld [vmem:[#allocation7 + $0x98] sm:$0xff]
        %v626 = vld [vmem:[#allocation7 + $0xa0] sm:$0xff]
        %v627 = vld [vmem:[#allocation7 + $0xa8] sm:$0xff]
        %v628 = vld [vmem:[#allocation7 + $0xb0] sm:$0xff]
        %v629 = vld [vmem:[#allocation7 + $0xb8] sm:$0xff]
        %v630 = vld [vmem:[#allocation7 + $0xc0] sm:$0xff]
        %v631 = vld [vmem:[#allocation7 + $0xc8] sm:$0xff]
        %v632 = vld [vmem:[#allocation7 + $0xd0] sm:$0xff]
        %v633 = vld [vmem:[#allocation7 + $0xd8] sm:$0xff]
        %v634 = vld [vmem:[#allocation7 + $0xe0] sm:$0xff]
        %v635 = vld [vmem:[#allocation7 + $0xe8] sm:$0xff]
        %v636 = vld [vmem:[#allocation7 + $0xf0] sm:$0xff]
        %v637 = vld [vmem:[#allocation7 + $0xf8] sm:$0xff]
        %638 = vmatprep.subr.mxu0 %v607
        %639 = vmatpush1.msra.mxu0 %v606
        %640 = vmatprep.subr.mxu0 %v609
        %641 = vmatpush1.msra.mxu0 %v608
        %642 = vmatprep.subr.mxu0 %v611
        %643 = vmatpush1.msra.mxu0 %v610
        %644 = vmatprep.subr.mxu0 %v613
        %645 = vmatpush1.msra.mxu0 %v612
        %646 = vmatprep.subr.mxu0 %v615
        %647 = vmatpush1.msra.mxu0 %v614
        %648 = vmatprep.subr.mxu0 %v617
        %649 = vmatpush1.msra.mxu0 %v616
        %650 = vmatprep.subr.mxu0 %v619
        %651 = vmatpush1.msra.mxu0 %v618
        %652 = vmatprep.subr.mxu0 %v621
        %653 = vmatpush1.msra.mxu0 %v620
        %654 = vmatprep.subr.mxu0 %v623
        %655 = vmatpush1.msra.mxu0 %v622
        %656 = vmatprep.subr.mxu0 %v625
        %657 = vmatpush1.msra.mxu0 %v624
        %658 = vmatprep.subr.mxu0 %v627
        %659 = vmatpush1.msra.mxu0 %v626
        %660 = vmatprep.subr.mxu0 %v629
        %661 = vmatpush1.msra.mxu0 %v628
        %662 = vmatprep.subr.mxu0 %v631
        %663 = vmatpush1.msra.mxu0 %v630
        %664 = vmatprep.subr.mxu0 %v633
        %665 = vmatpush1.msra.mxu0 %v632
        %666 = vmatprep.subr.mxu0 %v635
        %667 = vmatpush1.msra.mxu0 %v634
        %668 = vmatprep.subr.mxu0 %v637
        %669 = vmatpush1.msra.mxu0 %v636
        %670 = vmatprep.subr.mxu0 0.0
        %671 = vmatpush1.msra.mxu0 0.0
        %672 = vmatprep.subr.mxu0 0.0
        %673 = vmatpush1.msra.mxu0 0.0
        %674 = vmatprep.subr.mxu0 0.0
        %675 = vmatpush1.msra.mxu0 0.0
        %676 = vmatprep.subr.mxu0 0.0
        %677 = vmatpush1.msra.mxu0 0.0
        %678 = vmatprep.subr.mxu0 0.0
        %679 = vmatpush1.msra.mxu0 0.0
        %680 = vmatprep.subr.mxu0 0.0
        %681 = vmatpush1.msra.mxu0 0.0
        %682 = vmatprep.subr.mxu0 0.0
        %683 = vmatpush1.msra.mxu0 0.0
        %684 = vmatprep.subr.mxu0 0.0
        %685 = vmatpush1.msra.mxu0 0.0
        %686 = vmatprep.subr.mxu0 0.0
        %687 = vmatpush1.msra.mxu0 0.0
        %688 = vmatprep.subr.mxu0 0.0
        %689 = vmatpush1.msra.mxu0 0.0
        %690 = vmatprep.subr.mxu0 0.0
        %691 = vmatpush1.msra.mxu0 0.0
        %692 = vmatprep.subr.mxu0 0.0
        %693 = vmatpush1.msra.mxu0 0.0
        %694 = vmatprep.subr.mxu0 0.0
        %695 = vmatpush1.msra.mxu0 0.0
        %696 = vmatprep.subr.mxu0 0.0
        %697 = vmatpush1.msra.mxu0 0.0
        %698 = vmatprep.subr.mxu0 0.0
        %699 = vmatpush1.msra.mxu0 0.0
        %700 = vmatprep.subr.mxu0 0.0
        %701 = vmatpush1.msra.mxu0 0.0
        %702 = vmatprep.mubr.f32.mxu0 0.0
        %703 = vmatmul.mubr.f32.gmra.mrb[0].mxu0 %v604
        %v704 = vpop.f32.mrb[0].mxu0
        %v705 = vadd.f32 0.0, %v704
        %v706 = vpop.f32.mrb[0].mxu0
        %v707 = vadd.f32 0.0, %v706
        %708 = vmatprep.mubr.f32.mxu0 0.0
        %709 = vmatmul.mubr.f32.gmra.mrb[0].mxu0 %v605
        %v710 = vpop.f32.mrb[0].mxu0
        %v711 = vadd.f32 0.0, %v710
        %v712 = vpop.f32.mrb[0].mxu0
        %v713 = vadd.f32 0.0, %v712
        %714 = vdwg.mxu0
        %v715 = vadd.f32 %v705, %v309
        %v716 = vadd.f32 %v711, %v311
        %717 = vst [vmem:[%s231] sm:$0xff] %v715
        %718 = vst [vmem:[%s231 + $0x10] sm:$0xff] %v716
        %719 = vst [vmem:[%s231 + $0x8] sm:$0xff] %v707
        %720 = vst [vmem:[%s231 + $0x18] sm:$0xff] %v713
        %s721 = sand.u32 %s111, 1
        %s722 = scalar_lea.sflag [#allocation4], %s721
        %s723 = sand.u32 %s111, 1
        %s724 = smul.addr %s723, 32
        %s725 = scalar_lea.vmem [#allocation8], %s724
        // Predicated region
        $region45: #{tpu_custom_call.1} parent=31 // pred_check
          %p726 = pneg %p121
        $region46: #{tpu_custom_call.1} parent=31 // pred_check_branch
          %728 = sbr.rel (%p726) target = $region48
        $region47: #{tpu_custom_call.1} parent=31 // pred_region
          %s729 = smul.u32 2, %s26
          %s731 = ssub.s32 512, 512
          %732 = vsyncadd %s722, %s731
          %s733 = smul.addr %s729, 2
          %s734 = smul.addr %s25, 16
          %s735 = sadd.s32 %s733, %s734
          %s736 = smul.addr %s735, 128
          %s737 = scalar_lea.hbm %s3, %s736
          %s738 = sshll.u32 %s725, 4
          %s739 = int_to_ptr.vmem [resolvable:$true] %s738
          %744 = dma.vmem_to_hbm [thread:$0]  %s739, 512, %s737, %s722, 256, 256, 16
        $region48: #{tpu_custom_call.1} parent=31 // pred_fallthru
          _
      $region32: #{tpu_custom_call.1} parent=5 // pred_fallthru
        _
      %p745 = scmp.le.s32.totalorder 2, %s16
      // Predicated region
      $region49: #{tpu_custom_call.1} parent=5 // pred_check
        %p746 = pneg %p745
      $region50: #{tpu_custom_call.1} parent=5 // pred_check_branch
        %748 = sbr.rel (%p746) target = $region52
      $region51: #{tpu_custom_call.1} parent=5 // pred_region
        %s749 = ssub.s32 %s16, 2
        // Predicated region
        $region53: #{tpu_custom_call.1} parent=51 // pred_check
          %p750 = pneg %p127
        $region54: #{tpu_custom_call.1} parent=51 // pred_check_branch
          %752 = sbr.rel (%p750) target = $region56
        $region55: #{tpu_custom_call.1} parent=51 // pred_region
          %s753 = sand.u32 %s112, 1
          %s754 = scalar_lea.sflag [#allocation4], %s753
          %s755 = sand.u32 %s112, 1
          %s756 = smul.addr %s755, 32
          %s757 = scalar_lea.vmem [#allocation8], %s756
          %758 = dma.done %s754, 512
        $region56: #{tpu_custom_call.1} parent=51 // pred_fallthru
          _
      $region52: #{tpu_custom_call.1} parent=5 // pred_fallthru
        _
    $region6: #{tpu_custom_call.1} parent=1 // loop_footer
      %s20 = sadd.s32 1, %s16
    $region7: #{tpu_custom_call.1} parent=1 // loop_footer_branch
      %15 = sbr.rel target = $region3
    $region8: #{tpu_custom_call.1} parent=1 // loop_exit
      _
    %759 = vsyncpa [#allocation3], 1
    %s760 = scalar_lea.sflag [#allocation3], 1
    %761 = vsyncpa %s760, 1
    %762 = vsyncpa [#allocation6], 1
    %763 = vsyncpa [#allocation4], 1
    %s764 = scalar_lea.sflag [#allocation4], 1
    %765 = vsyncpa %s764, 1

</llo_original>
